<compile_context>
chip_gen: v6e
topology: v6e:2x2x1
jax: 0.10.0
libtpu: 0.0.40
codegen_flags: <defaults>
</compile_context>

<pallas_src>
import functools

import jax
import jax.numpy as jnp
from jax.experimental import pallas as pl
from jax.experimental.pallas import tpu as pltpu


def _round_up(x: int, m: int) -> int:
    return ((x + m - 1) // m) * m


def logreg_kernel(x_ref, w_ref, b_ref, o_ref):
    # x_ref: (TM, D_in), w_ref: (D_in, D_out_eff)  -- native (K, N) MXU feed
    # b_ref: (1, D_out_eff), o_ref: (TM, D_out_eff)
    z = jnp.dot(x_ref[...], w_ref[...], preferred_element_type=jnp.float32)
    z = z + b_ref[...]                     # broadcast bias over batch rows (f32)
    o_ref[...] = jax.nn.sigmoid(z).astype(o_ref.dtype)


_VMEM_LIMIT_BYTES = 48 << 20     # raise past the 16/32 MiB default scoped limits
_WORKING_SET_BUDGET = 40 << 20   # headroom under v7x's 64 MiB physical VMEM


def _choose_tm(B: int, D_in: int, D_out_eff: int) -> int:
    """Pick the batch tile so x blocks are MB-scale and the working set fits VMEM."""
    # Target ~2 MiB f32 x blocks so the grid loop is bandwidth- not overhead-bound.
    tm = (2 << 20) // (4 * max(D_in, 1))
    tm = max(256, min(tm, 2048))
    tm = _round_up(tm, 8)
    tm = min(tm, _round_up(B, 8))

    # Working set: double-buffered x + resident weight/bias + double-buffered out.
    def ws(t):
        return 4 * (2 * t * D_in + D_in * D_out_eff + D_out_eff + 2 * t * D_out_eff)

    while tm > 8 and ws(tm) > _WORKING_SET_BUDGET:
        tm = max(8, _round_up(tm // 2, 8))

    # Keep >= 2 grid steps when possible so "parallel" shards across v7x's 2 TCs.
    if B > 8 and pl.cdiv(B, tm) < 2:
        tm = max(8, _round_up(pl.cdiv(B, 2), 8))
    return tm


@functools.partial(jax.jit, static_argnames=("tm",))
def logistic_regression(x, weight, bias, *, tm=None):
    """sigmoid(x @ weight.T + bias).

    x: (B, D_in) f32; weight: (D_out, D_in) f32 (PyTorch Linear layout); bias: (D_out,).
    """
    B, D_in = x.shape
    D_out = weight.shape[0]

    # Conditional lane-padding of D_out: only when the padding overhead is <= 2x
    # (D_out >= 64); for tiny D_out masked stores beat the extra HBM bytes.
    pad_lanes = (D_out % 128 != 0) and (D_out >= 64)
    D_out_eff = _round_up(D_out, 128) if pad_lanes else D_out

    # One-time prep of the tiny weight/bias: transpose to a lane-dense (K, N) feed.
    w_t = weight.T                                     # (D_in, D_out)
    if pad_lanes:
        w_t = jnp.pad(w_t, ((0, 0), (0, D_out_eff - D_out)))
        bias = jnp.pad(bias, (0, D_out_eff - D_out))
    b2d = bias.reshape(1, D_out_eff)

    TM = _choose_tm(B, D_in, D_out_eff) if tm is None else tm
    grid = (pl.cdiv(B, TM),)                           # ragged last block: no x padding

    out = pl.pallas_call(
        logreg_kernel,
        out_shape=jax.ShapeDtypeStruct((B, D_out_eff), x.dtype),
        grid_spec=pltpu.PrefetchScalarGridSpec(
            num_scalar_prefetch=0,
            grid=grid,
            in_specs=[
                pl.BlockSpec((TM, D_in), lambda i: (i, 0)),          # streamed x tiles
                pl.BlockSpec((D_in, D_out_eff), lambda i: (0, 0)),   # resident W^T
                pl.BlockSpec((1, D_out_eff), lambda i: (0, 0)),      # resident bias
            ],
            out_specs=pl.BlockSpec((TM, D_out_eff), lambda i: (i, 0)),
        ),
        compiler_params=pltpu.CompilerParams(
            dimension_semantics=("parallel",),   # shard batch tiles across TCs (v7x)
            vmem_limit_bytes=_VMEM_LIMIT_BYTES,
        ),
    )(x, w_t, b2d)

    if pad_lanes:
        out = out[:, :D_out]     # drop lane padding (padded cols hold sigmoid(0)=0.5)
    return out


if __name__ == "__main__":
    key = jax.random.PRNGKey(0)

    def make_case(k, B, d_in, d_out):
        k_x, k_w, k_b = jax.random.split(k, 3)
        # Mimic torch.nn.Linear's uniform(-1/sqrt(fan_in), 1/sqrt(fan_in)) init.
        bound = 1.0 / jnp.sqrt(jnp.float32(d_in))
        w = jax.random.uniform(k_w, (d_out, d_in), jnp.float32, -bound, bound)
        b = jax.random.uniform(k_b, (d_out,), jnp.float32, -bound, bound)
        x = jax.random.normal(k_x, (B, d_in), jnp.float32)
        return x, w, b

    cases = [
        (8, 32, 16),    # small D_out -> unpadded (masked-store) path, single tile
        (44, 32, 16),   # >= 2 grid steps with B % TM != 0 (ragged last batch block)
        (8, 32, 72),    # D_out >= 64 -> lane-padded path + slice-back
    ]
    keys = jax.random.split(key, len(cases))
    for k, (B, d_in, d_out) in zip(keys, cases):
        x, w, b = make_case(k, B, d_in, d_out)
        out = logistic_regression(x, w, b)
        jax.block_until_ready(out)
        ref = jax.nn.sigmoid(x @ w.T + b)       # matches torch: sigmoid(linear(x))
        assert out.shape == (B, d_out), (out.shape, (B, d_out))
        assert jnp.allclose(out, ref, atol=1e-5, rtol=1e-5)

    print("KERNEL_OK")
</pallas_src>

<mosaic_0001>
module attributes {stable_mosaic.version = 11 : i64} {
  func.func @logreg_kernel(%arg0: i32, %arg1: memref<8x32xf32, #tpu.memory_space<vmem>>, %arg2: memref<32x16xf32, #tpu.memory_space<vmem>>, %arg3: memref<1x16xf32, #tpu.memory_space<vmem>>, %arg4: memref<8x16xf32, #tpu.memory_space<vmem>>) attributes {dimension_semantics = [#tpu.dimension_semantics<parallel>], iteration_bounds = array<i64: 1>, scalar_prefetch = 0 : i64, scratch_operands = 0 : i64, tpu.core_type = #tpu.core_type<tc>, window_params = [{transform_indices = @transform_0, window_bounds = array<i64: 8, 32>}, {pipeline_mode = #tpu.pipeline_mode<synchronous>, transform_indices = @transform_1, window_bounds = array<i64: 32, 16>}, {pipeline_mode = #tpu.pipeline_mode<synchronous>, transform_indices = @transform_2, window_bounds = array<i64: 1, 16>}, {transform_indices = @transform_3, window_bounds = array<i64: 8, 16>}]} {
    %c0 = arith.constant 0 : index
    %c0_0 = arith.constant 0 : index
    %0 = vector.load %arg1[%c0, %c0_0] : memref<8x32xf32, #tpu.memory_space<vmem>>, vector<8x32xf32>
    %c0_1 = arith.constant 0 : index
    %c0_2 = arith.constant 0 : index
    %1 = vector.load %arg2[%c0_1, %c0_2] : memref<32x16xf32, #tpu.memory_space<vmem>>, vector<32x16xf32>
    %cst = arith.constant dense<0.000000e+00> : vector<8x16xf32>
    %2 = tpu.matmul %0, %1, %cst {dimension_numbers = #tpu.dot_dimension_numbers<[1], [0], [0], [1], [0, 0, 1, 1], [], []>} : vector<8x32xf32>, vector<32x16xf32>, vector<8x16xf32> -> vector<8x16xf32>
    %c0_3 = arith.constant 0 : index
    %c0_4 = arith.constant 0 : index
    %3 = vector.load %arg3[%c0_3, %c0_4] : memref<1x16xf32, #tpu.memory_space<vmem>>, vector<1x16xf32>
    %4 = vector.broadcast %3 : vector<1x16xf32> to vector<8x16xf32>
    %5 = arith.addf %2, %4 : vector<8x16xf32>
    %6 = arith.negf %5 : vector<8x16xf32>
    %7 = math.exp %6 : vector<8x16xf32>
    %cst_5 = arith.constant 1.000000e+00 : f32
    %8 = vector.broadcast %cst_5 : f32 to vector<8x16xf32>
    %9 = arith.addf %8, %7 : vector<8x16xf32>
    %10 = arith.divf %8, %9 : vector<8x16xf32>
    %c0_6 = arith.constant 0 : index
    %c0_7 = arith.constant 0 : index
    %11 = vector.load %arg4[%c0_6, %c0_7] : memref<8x16xf32, #tpu.memory_space<vmem>>, vector<8x16xf32>
    tpu.vector_store %arg4[%c0_6, %c0_7], %10 {strides = array<i32>} : memref<8x16xf32, #tpu.memory_space<vmem>>, vector<8x16xf32>,
    return
  }
  func.func @transform_0(%arg0: i32) -> (i32, i32) {
    %c0_i32 = arith.constant 0 : i32
    %c0_i32_0 = arith.constant 0 : i32
    return %arg0, %c0_i32 : i32, i32
  }
  func.func @transform_1(%arg0: i32) -> (i32, i32) {
    %c0_i32 = arith.constant 0 : i32
    %c0_i32_0 = arith.constant 0 : i32
    %c0_i32_1 = arith.constant 0 : i32
    return %c0_i32, %c0_i32_0 : i32, i32
  }
  func.func @transform_2(%arg0: i32) -> (i32, i32) {
    %c0_i32 = arith.constant 0 : i32
    %c0_i32_0 = arith.constant 0 : i32
    %c0_i32_1 = arith.constant 0 : i32
    return %c0_i32, %c0_i32_0 : i32, i32
  }
  func.func @transform_3(%arg0: i32) -> (i32, i32) {
    %c0_i32 = arith.constant 0 : i32
    %c0_i32_0 = arith.constant 0 : i32
    return %arg0, %c0_i32 : i32, i32
  }
}

</mosaic_0001>

<llo_original>
// kernel: logistic_regression.1
$region0: #{logistic_regression.1}
  #allocation0 [shape = 'u32[]', space=smem, size = 0x4, offset = 0x4, fixed_abs, tag = 'smem constant byte address 0x4 - core index']
  #allocation1 [shape = 'u32[144,128]{1,0:T(1,128)}', space=vmem, size = 0x12000, scoped, tag = 'internal scratch']
  %s0 = inlined_call_operand.vmem [shape: f32[8,32], index: 0, kind: input, shape index: {}]
  %s1 = inlined_call_operand.vmem [shape: f32[32,16], index: 1, kind: input, shape index: {}]
  %s2 = inlined_call_operand.vmem [shape: f32[1,16], index: 2, kind: input, shape index: {}]
  %s3 = inlined_call_operand.hbm [shape: f32[8,16], index: 3, kind: output, shape index: {}]
  %s4 = sld [smem:[#allocation0]]
  $region22: #{logistic_regression.1} parent=0
    _
  %s6 = ssub.s32 1, %s4
  %s7 = scalar_select 0, %s6, %s4
  $region1: #{logistic_regression.1} parent=0
    #allocation2 [shape = 'u8[4096]{0}', space=vmem, size = 0x1000, scoped, tag = 'output window, operand 0, single buffered']
    #allocation3 [shape = 's32[1]{0}', space=sflag, size = 0x4, scoped, tag = 'scoped memory for logistic_regression.1']
    %8 = vsyncpa [#allocation3], 0
    // Predicated region
    $region2: #{logistic_regression.1} parent=1 // pred_check
      _
    $region3: #{logistic_regression.1} parent=1 // pred_check_branch
      %10 = sbr.rel (0) target = $region5
    $region4: #{logistic_regression.1} parent=1 // pred_region
      _
    $region5: #{logistic_regression.1} parent=1 // pred_fallthru
      _
    // Predicated region
    $region6: #{logistic_regression.1} parent=1 // pred_check
      _
    $region7: #{logistic_regression.1} parent=1 // pred_check_branch
      %12 = sbr.rel (0) target = $region9
    $region8: #{logistic_regression.1} parent=1 // pred_region
      _
    $region9: #{logistic_regression.1} parent=1 // pred_fallthru
      _
    // Predicated region
    $region10: #{logistic_regression.1} parent=1 // pred_check
      _
    $region11: #{logistic_regression.1} parent=1 // pred_check_branch
      %14 = sbr.rel (0) target = $region13
    $region12: #{logistic_regression.1} parent=1 // pred_region
      _
    $region13: #{logistic_regression.1} parent=1 // pred_fallthru
      _
    %v15 = vld [vmem:[%s0] sm:$0xff]
    %v16 = vld [vmem:[%s1] sm:$0xff]
    %v17 = vld [vmem:[%s1 + $0x8] sm:$0xff]
    %v18 = vld [vmem:[%s1 + $0x10] sm:$0xff]
    %v19 = vld [vmem:[%s1 + $0x18] sm:$0xff]
    %v20 = vld [vmem:[%s2] sm:$0x1]
    %v22 = vlaneseq
    %v23 = vshrl.u32 %v22, 7
    %v24 = vsub.s32 0, %v23
    %v25 = vrot.slane %v20, %v24
    %vm27 = vcmask 261120
    %v29 = vsel %vm27, %v15, 0
    %31 = vmatprep.subr.mxu0 0.0
    %32 = vmatpush1.msra.mxu0 0.0
    %33 = vmatprep.subr.mxu0 0.0
    %34 = vmatpush1.msra.mxu0 0.0
    %35 = vmatprep.subr.mxu0 0.0
    %36 = vmatpush1.msra.mxu0 0.0
    %37 = vmatprep.subr.mxu0 0.0
    %38 = vmatpush1.msra.mxu0 0.0
    %39 = vmatprep.subr.mxu0 0.0
    %40 = vmatpush1.msra.mxu0 0.0
    %41 = vmatprep.subr.mxu0 0.0
    %42 = vmatpush1.msra.mxu0 0.0
    %43 = vmatprep.subr.mxu0 0.0
    %44 = vmatpush1.msra.mxu0 0.0
    %45 = vmatprep.subr.mxu0 0.0
    %46 = vmatpush1.msra.mxu0 0.0
    %47 = vmatprep.subr.mxu0 0.0
    %48 = vmatpush1.msra.mxu0 0.0
    %49 = vmatprep.subr.mxu0 0.0
    %50 = vmatpush1.msra.mxu0 0.0
    %51 = vmatprep.subr.mxu0 0.0
    %52 = vmatpush1.msra.mxu0 0.0
    %53 = vmatprep.subr.mxu0 0.0
    %54 = vmatpush1.msra.mxu0 0.0
    %55 = vmatprep.subr.mxu0 0.0
    %56 = vmatpush1.msra.mxu0 %v19
    %57 = vmatprep.subr.mxu0 0.0
    %58 = vmatpush1.msra.mxu0 %v18
    %59 = vmatprep.subr.mxu0 0.0
    %60 = vmatpush1.msra.mxu0 %v17
    %61 = vmatprep.subr.mxu0 0.0
    %62 = vmatpush1.msra.mxu0 %v16
    %63 = vmatprep.subr.mxu0 0.0
    %64 = vmatpush2.msra.mxu0 0.0
    %65 = vmatprep.subr.mxu0 0.0
    %66 = vmatpush2.msra.mxu0 0.0
    %67 = vmatprep.subr.mxu0 0.0
    %68 = vmatpush2.msra.mxu0 0.0
    %69 = vmatprep.subr.mxu0 0.0
    %70 = vmatpush2.msra.mxu0 0.0
    %71 = vmatprep.subr.mxu0 0.0
    %72 = vmatpush2.msra.mxu0 0.0
    %73 = vmatprep.subr.mxu0 0.0
    %74 = vmatpush2.msra.mxu0 0.0
    %75 = vmatprep.subr.mxu0 0.0
    %76 = vmatpush2.msra.mxu0 0.0
    %77 = vmatprep.subr.mxu0 0.0
    %78 = vmatpush2.msra.mxu0 0.0
    %79 = vmatprep.subr.mxu0 0.0
    %80 = vmatpush2.msra.mxu0 0.0
    %81 = vmatprep.subr.mxu0 0.0
    %82 = vmatpush2.msra.mxu0 0.0
    %83 = vmatprep.subr.mxu0 0.0
    %84 = vmatpush2.msra.mxu0 0.0
    %85 = vmatprep.subr.mxu0 0.0
    %86 = vmatpush2.msra.mxu0 0.0
    %87 = vmatprep.subr.mxu0 0.0
    %88 = vmatpush2.msra.mxu0 0.0
    %89 = vmatprep.subr.mxu0 0.0
    %90 = vmatpush2.msra.mxu0 0.0
    %91 = vmatprep.subr.mxu0 0.0
    %92 = vmatpush2.msra.mxu0 0.0
    %93 = vmatprep.subr.mxu0 0.0
    %94 = vmatpush2.msra.mxu0 0.0
    %95 = vmatprep.mubr.f32.mxu0 0.0
    %96 = vmatmul.mubr.f32.gmra.mxu0 %v29
    %v97 = vpop.f32.mrf.mxu0
    %v98 = vadd.f32 %v25, %v97
    %v99 = vpop.f32.mrf.mxu0
    %100 = vdwg.mxu0
    %v101 = vxor.u32 %v98, 2147483648
    %v102 = vmul.f32 %v101, 1.442695
    %v103 = vpow.pop %v102
    %v104 = vadd.f32 %v103, 1.0
    %v105 = vrcp.pop %v104
    %v106 = vmul.f32 1.0, %v105
    %vm107 = vcmask 130048
    %108 = vst.msk [vmem:[#allocation2] sm:$0xff] %vm107, %v106
    // Predicated region
    $region14: #{logistic_regression.1} parent=1 // pred_check
      _
    $region15: #{logistic_regression.1} parent=1 // pred_check_branch
      %110 = sbr.rel (0) target = $region17
    $region16: #{logistic_regression.1} parent=1 // pred_region
      %s112 = ssub.s32 128, 128
      %113 = vsyncadd [#allocation3], %s112
      %s115 = sshll.u32 [#allocation2], 4
      %s116 = int_to_ptr.vmem [resolvable:$true] %s115
      %118 = dma.vmem_to_hbm [thread:$0]  %s116, 128, %s3, [#allocation3]
    $region17: #{logistic_regression.1} parent=1 // pred_fallthru
      _
    // Predicated region
    $region18: #{logistic_regression.1} parent=1 // pred_check
      _
    $region19: #{logistic_regression.1} parent=1 // pred_check_branch
      %120 = sbr.rel (0) target = $region21
    $region20: #{logistic_regression.1} parent=1 // pred_region
      %121 = dma.done [#allocation3], 128
    $region21: #{logistic_regression.1} parent=1 // pred_fallthru
      _
    %122 = vsyncpa [#allocation3], 1

</llo_original>
